<compile_context>
chip_gen: v6e
topology: v6e:2x2x1
jax: 0.10.0
libtpu: 0.0.40
codegen_flags: <defaults>
</compile_context>

<pallas_src>
import jax
import jax.numpy as jnp
from jax.experimental import pallas as pl
from jax.experimental.pallas import tpu as pltpu

_LANES = 128
# Below this element count a pallas_call is pure launch/reshape overhead
# versus a single fused XLA multiply.
_FAST_PATH_ELEMS = 1 << 20


def _mul_kernel(mult_ref, x_ref, loc_ref):
    # mult lives in SMEM as a (1,1) scalar: one scalar-slot load per block,
    # never on the VPU/DMA critical path.
    m = mult_ref[0, 0]
    loc_ref[...] = (x_ref[...] * m).astype(loc_ref.dtype)


def _sublane_pack(dtype):
    # Rows per packed vreg tile: 8 for 4-byte, 16 for 2-byte, 32 for 1-byte.
    return 8 * max(1, 4 // jnp.dtype(dtype).itemsize)


def _round_up(x, m):
    return ((x + m - 1) // m) * m


def _pick_block_rows(rows, dtype):
    """Largest lane-dense block whose double-buffered in+out fits scoped VMEM."""
    pack = _sublane_pack(dtype)
    itemsize = jnp.dtype(dtype).itemsize
    try:
        kind = jax.devices()[0].device_kind.lower()
    except Exception:
        kind = ""
    # Budget for (input + output) x (2 pipeline buffers) = 4 buffers:
    # v5e scoped-VMEM default is 16 MiB -> keep <= 8 MiB of buffers;
    # v6e / v7x defaults are 32 MiB      -> keep <= 16 MiB of buffers.
    budget = (8 << 20) if "v5" in kind else (16 << 20)
    cap = budget // (4 * _LANES * itemsize)
    cap = max(pack, (cap // pack) * pack)
    if rows <= cap:
        # Fits in one block.  If there is enough work, split in two so the
        # "parallel" grid axis can actually use both TensorCores (v7x).
        if rows >= 2 * pack:
            return _round_up(pl.cdiv(rows, 2), pack)
        return rows  # full-dim block: legal regardless of (8,128) divisibility
    return cap


def transition_forward(previous_latents, mult, scale, *, force_pallas=False):
    """Pallas equivalent of Transition.forward.

    Args:
      previous_latents: list of (B, P, D) arrays (only [-1] is used).
      mult: python float OR traced/learnable JAX scalar.
      scale: python float (or scalar).
      force_pallas: force the Pallas path even below the small-size threshold
        (used for testing).

    Returns:
      (loc, scale_expanded): parameters of the FULLY_EXPANDED Normal.
      loc has the same shape AND dtype as the latent; scale_expanded is
      broadcast to loc.shape (a lazy XLA broadcast outside the kernel).
    """
    x = previous_latents[-1]
    orig_shape = x.shape
    dtype = x.dtype
    n = x.size

    mult_scalar = jnp.asarray(mult, dtype=jnp.float32)  # works for tracers too
    scale_full = jnp.broadcast_to(jnp.asarray(scale, dtype=dtype), orig_shape)

    # ---- small-size fast path: let XLA fuse the elementwise multiply -------
    if n < _FAST_PATH_ELEMS and not force_pallas:
        loc = (x.astype(jnp.float32) * mult_scalar).astype(dtype)
        return loc, scale_full

    # ---- lane-dense slab for the Pallas path --------------------------------
    # Common case (P power of two, D=4 -> n % 128 == 0): no pad, no post-slice.
    rows = pl.cdiv(n, _LANES)
    n_padded = rows * _LANES
    x_flat = jnp.ravel(x)
    if n_padded != n:
        x_flat = jnp.pad(x_flat, (0, n_padded - n))
    x2d = x_flat.reshape(rows, _LANES)

    block_rows = _pick_block_rows(rows, dtype)
    grid = (pl.cdiv(rows, block_rows),)  # partial last block is masked by Pallas

    loc2d = pl.pallas_call(
        _mul_kernel,
        out_shape=jax.ShapeDtypeStruct((rows, _LANES), dtype),
        grid=grid,
        in_specs=[
            pl.BlockSpec(memory_space=pltpu.MemorySpace.SMEM),       # mult (1,1)
            pl.BlockSpec((block_rows, _LANES), lambda i: (i, 0)),    # latent
        ],
        out_specs=pl.BlockSpec((block_rows, _LANES), lambda i: (i, 0)),
        compiler_params=pltpu.CompilerParams(
            dimension_semantics=("parallel",)
        ),
    )(mult_scalar.reshape(1, 1), x2d)

    if n_padded != n:
        loc = loc2d.reshape(-1)[:n].reshape(orig_shape)
    else:
        loc = loc2d.reshape(orig_shape)

    # TODO(synk): torch.distributions.Normal / set_batch_shape_mode are
    # python-side containers with no tensor compute; we return their params.
    return loc, scale_full


if __name__ == "__main__":
    key = jax.random.PRNGKey(0)
    init_mult = 1.2
    scale = 0.5

    # 1) Original tiny 2D forward-kinematics SMC shape: batch=2, particles=8,
    #    latent_dim=4 (x, y, vx, vy).  Takes the small-size fast path.
    B, P, D = 2, 8, 4
    k0, k1 = jax.random.split(key)
    latents = [
        jax.random.normal(k0, (B, P, D), dtype=jnp.float32),
        jax.random.normal(k1, (B, P, D), dtype=jnp.float32),
    ]
    loc, scale_out = transition_forward(latents, init_mult, scale)
    loc = jax.block_until_ready(loc)
    scale_out = jax.block_until_ready(scale_out)
    ref = init_mult * latents[-1]
    assert loc.shape == ref.shape and loc.dtype == ref.dtype, "loc shape/dtype"
    assert jnp.allclose(loc, ref, atol=1e-6), "fast-path loc mismatch"
    assert scale_out.shape == ref.shape, "scale not FULLY_EXPANDED"
    assert jnp.allclose(scale_out, jnp.full_like(ref, scale), atol=1e-6)

    # 1b) Same tiny shape but forcing the Pallas path (exercises the ragged
    #     pad + slice branch and a full-dim single block).
    loc1b, _ = transition_forward(latents, init_mult, scale, force_pallas=True)
    loc1b = jax.block_until_ready(loc1b)
    assert jnp.allclose(loc1b, ref, atol=1e-6), "pallas tiny-path loc mismatch"

    # 2) Pallas path on a still-small but lane-aligned shape (n % 128 == 0):
    #    no pad/slice, 2-block "parallel" grid.
    P2 = 1024
    k2, k3 = jax.random.split(k1)
    lat2 = [jax.random.normal(k2, (B, P2, D), dtype=jnp.float32)]
    loc2, scale2 = transition_forward(lat2, init_mult, scale, force_pallas=True)
    loc2 = jax.block_until_ready(loc2)
    ref2 = init_mult * lat2[-1]
    assert loc2.shape == ref2.shape and loc2.dtype == ref2.dtype
    assert jnp.allclose(loc2, ref2, atol=1e-6), "pallas loc mismatch"
    assert scale2.shape == ref2.shape

    # 3) bf16 latent: dtype preserved end-to-end (halved HBM traffic).
    lat3 = [jax.random.normal(k3, (B, P2, D), dtype=jnp.float32).astype(jnp.bfloat16)]
    loc3, _ = transition_forward(lat3, init_mult, scale, force_pallas=True)
    loc3 = jax.block_until_ready(loc3)
    ref3 = (lat3[-1].astype(jnp.float32) * init_mult).astype(jnp.bfloat16)
    assert loc3.dtype == jnp.bfloat16, "bf16 output dtype not preserved"
    assert jnp.allclose(loc3.astype(jnp.float32), ref3.astype(jnp.float32),
                        atol=2e-2), "bf16 loc mismatch"

    # 4) mult as a JAX scalar (learnable-parameter style): no float() baking.
    loc4, _ = transition_forward(lat2, jnp.float32(init_mult), scale,
                                 force_pallas=True)
    loc4 = jax.block_until_ready(loc4)
    assert jnp.allclose(loc4, ref2, atol=1e-6), "traced-mult loc mismatch"

    print("KERNEL_OK")
</pallas_src>

<mosaic_0001>
module attributes {stable_mosaic.version = 11 : i64} {
  func.func @_mul_kernel(%arg0: i32, %arg1: memref<1x1xf32, #tpu.memory_space<smem>>, %arg2: memref<1x128xf32, #tpu.memory_space<vmem>>, %arg3: memref<1x128xf32, #tpu.memory_space<vmem>>) attributes {dimension_semantics = [#tpu.dimension_semantics<parallel>], iteration_bounds = array<i64: 1>, scalar_prefetch = 0 : i64, scratch_operands = 0 : i64, tpu.core_type = #tpu.core_type<tc>, window_params = [{transform_indices = @transform_0, window_bounds = array<i64: 1, 1>}, {transform_indices = @transform_1, window_bounds = array<i64: 1, 128>}, {transform_indices = @transform_2, window_bounds = array<i64: 1, 128>}]} {
    %c0 = arith.constant 0 : index
    %c0_0 = arith.constant 0 : index
    %0 = memref.load %arg1[%c0, %c0_0] : memref<1x1xf32, #tpu.memory_space<smem>>
    %c0_1 = arith.constant 0 : index
    %c0_2 = arith.constant 0 : index
    %1 = vector.load %arg2[%c0_1, %c0_2] : memref<1x128xf32, #tpu.memory_space<vmem>>, vector<1x128xf32>
    %2 = vector.broadcast %0 : f32 to vector<1x128xf32>
    %3 = arith.mulf %1, %2 : vector<1x128xf32>
    %c0_3 = arith.constant 0 : index
    %c0_4 = arith.constant 0 : index
    %4 = vector.load %arg3[%c0_3, %c0_4] : memref<1x128xf32, #tpu.memory_space<vmem>>, vector<1x128xf32>
    tpu.vector_store %arg3[%c0_3, %c0_4], %3 {strides = array<i32>} : memref<1x128xf32, #tpu.memory_space<vmem>>, vector<1x128xf32>,
    return
  }
  func.func @transform_0(%arg0: i32) -> (i32, i32) {
    %c0_i32 = arith.constant 0 : i32
    %c0_i32_0 = arith.constant 0 : i32
    %c0_i32_1 = arith.constant 0 : i32
    return %c0_i32, %c0_i32_0 : i32, i32
  }
  func.func @transform_1(%arg0: i32) -> (i32, i32) {
    %c0_i32 = arith.constant 0 : i32
    %c0_i32_0 = arith.constant 0 : i32
    return %arg0, %c0_i32 : i32, i32
  }
  func.func @transform_2(%arg0: i32) -> (i32, i32) {
    %c0_i32 = arith.constant 0 : i32
    %c0_i32_0 = arith.constant 0 : i32
    return %arg0, %c0_i32 : i32, i32
  }
}

</mosaic_0001>

<llo_original>
// kernel: tpu_custom_call.1
$region0: #{tpu_custom_call.1}
  #allocation0 [shape = 'u32[]', space=smem, size = 0x4, offset = 0x4, fixed_abs, tag = 'smem constant byte address 0x4 - core index']
  #allocation1 [shape = 'u32[144,128]{1,0:T(1,128)}', space=vmem, size = 0x12000, scoped, tag = 'internal scratch']
  #allocation2 [shape = 'f32[1,1]{1,0:T(1,128)S(6)}', space=smem, size = 0x200, scoped, tag = 'scoped memory for tpu_custom_call.1']
  %s0 = inlined_call_operand.<no memory space> [shape: f32[1,1], index: 0, kind: input, shape index: {}]
  %s1 = inlined_call_operand.vmem [shape: f32[1,128], index: 1, kind: input, shape index: {}]
  %s2 = inlined_call_operand.hbm [shape: f32[1,128], index: 2, kind: output, shape index: {}]
  %s3 = sld [smem:[#allocation0]]
  $region18: #{tpu_custom_call.1} parent=0
    _
  %s5 = ssub.s32 1, %s3
  %s6 = scalar_select 0, %s5, %s3
  %7 = sst [smem:[#allocation2]] %s0
  $region1: #{tpu_custom_call.1} parent=0
    #allocation3 [shape = 'u8[512]{0}', space=vmem, size = 0x400, scoped, tag = 'output window, operand 0, single buffered']
    #allocation4 [shape = 's32[1]{0}', space=sflag, size = 0x4, scoped, tag = 'scoped memory for tpu_custom_call.1']
    %8 = vsyncpa [#allocation4], 0
    // Predicated region
    $region2: #{tpu_custom_call.1} parent=1 // pred_check
      _
    $region3: #{tpu_custom_call.1} parent=1 // pred_check_branch
      %10 = sbr.rel (0) target = $region5
    $region4: #{tpu_custom_call.1} parent=1 // pred_region
      _
    $region5: #{tpu_custom_call.1} parent=1 // pred_fallthru
      _
    // Predicated region
    $region6: #{tpu_custom_call.1} parent=1 // pred_check
      _
    $region7: #{tpu_custom_call.1} parent=1 // pred_check_branch
      %12 = sbr.rel (0) target = $region9
    $region8: #{tpu_custom_call.1} parent=1 // pred_region
      _
    $region9: #{tpu_custom_call.1} parent=1 // pred_fallthru
      _
    %s13 = sld [smem:[#allocation2]]
    %v14 = vld [vmem:[%s1] sm:$0x1]
    %v15 = vstv %s13
    %v16 = vmul.f32 %v14, %v15
    %17 = vst [vmem:[#allocation3] sm:$0x1] %v16
    // Predicated region
    $region10: #{tpu_custom_call.1} parent=1 // pred_check
      _
    $region11: #{tpu_custom_call.1} parent=1 // pred_check_branch
      %19 = sbr.rel (0) target = $region13
    $region12: #{tpu_custom_call.1} parent=1 // pred_region
      %s21 = ssub.s32 16, 16
      %22 = vsyncadd [#allocation4], %s21
      %s24 = sshll.u32 [#allocation3], 4
      %s25 = int_to_ptr.vmem [resolvable:$true] %s24
      %27 = dma.vmem_to_hbm [thread:$0]  %s25, 16, %s2, [#allocation4]
    $region13: #{tpu_custom_call.1} parent=1 // pred_fallthru
      _
    // Predicated region
    $region14: #{tpu_custom_call.1} parent=1 // pred_check
      _
    $region15: #{tpu_custom_call.1} parent=1 // pred_check_branch
      %29 = sbr.rel (0) target = $region17
    $region16: #{tpu_custom_call.1} parent=1 // pred_region
      %30 = dma.done [#allocation4], 16
    $region17: #{tpu_custom_call.1} parent=1 // pred_fallthru
      _
    %31 = vsyncpa [#allocation4], 1

</llo_original>
